<compile_context>
chip_gen: v7x
topology: tpu7x:2x2x1
jax: 0.10.0
libtpu: 0.0.40
codegen_flags: <defaults>
</compile_context>

<pallas_src>
import functools
import math

import jax
import jax.numpy as jnp
from jax import lax
from jax.experimental import pallas as pl
from jax.experimental.pallas import tpu as pltpu

_LANE = 128
_SUBLANE = 8


def _iou_kernel(pred_ref, target_ref, out_ref, acc_tp_ref, acc_sum_ref,
                *, tm, m_rows):
    """One (TM, 128) block of one batch element.

    tm, m_rows are static (Python ints): tm = rows per block, m_rows = valid
    rows per sample.  When m_rows % tm != 0 the last k block overhangs the
    array and its out-of-bounds rows are masked to zero.
    """
    k = pl.program_id(1)
    nk = pl.num_programs(1)

    # Reset per-batch accumulators at the first inner step.
    @pl.when(k == 0)
    def _():
        acc_tp_ref[...] = jnp.zeros_like(acc_tp_ref)
        acc_sum_ref[...] = jnp.zeros_like(acc_sum_ref)

    nchunks = tm // _SUBLANE
    ragged = (m_rows % tm) != 0          # static: masking only when needed
    row_base = k * tm
    row_iota = (
        lax.broadcasted_iota(jnp.int32, (_SUBLANE, _LANE), 0) if ragged else None
    )

    # Fused reduction trees over (8,128) chunks: each chunk of t and p is
    # loaded from VMEM once; partials live in two loop-carried vregs.
    def body(i, carry):
        acc_tp, acc_sum = carry
        r = pl.multiple_of(i * _SUBLANE, _SUBLANE)
        t = target_ref[pl.ds(r, _SUBLANE), :].astype(jnp.float32)
        p = pred_ref[pl.ds(r, _SUBLANE), :].astype(jnp.float32)
        if ragged:
            valid = (row_base + r + row_iota) < m_rows
            t = jnp.where(valid, t, 0.0)
            p = jnp.where(valid, p, 0.0)
        return acc_tp + t * p, acc_sum + (t + p)

    zeros = jnp.zeros((_SUBLANE, _LANE), jnp.float32)
    unroll = nchunks if nchunks <= 8 else 8
    acc_tp, acc_sum = lax.fori_loop(0, nchunks, body, (zeros, zeros),
                                    unroll=unroll)

    acc_tp_ref[...] += acc_tp
    acc_sum_ref[...] += acc_sum

    # Finalize once per batch: cross-lane reduce + divide, write per-batch loss.
    @pl.when(k == nk - 1)
    def _():
        iand = jnp.sum(acc_tp_ref[...])
        total = jnp.sum(acc_sum_ref[...])          # sum(t) + sum(p)
        ior = total - iand
        # NOTE: ior == 0 (both masks empty) yields NaN/Inf, matching PyTorch.
        loss = 1.0 - iand / ior
        out_ref[...] = jnp.broadcast_to(loss, out_ref.shape).astype(out_ref.dtype)


def iou_loss(pred, target, *, tile_bytes=1 << 20, tile_rows=None):
    """Pallas implementation of IOU().forward(pred, target). Returns f32 scalar.

    tile_bytes: target HBM bytes per input block per grid step (~1 MiB each =>
    ~2 MiB/step total input traffic).  tile_rows overrides directly if set.
    """
    assert pred.shape == target.shape
    B = pred.shape[0]
    n = math.prod(pred.shape[1:])

    # Rows of 128 lanes per sample.
    m = -(-n // _LANE)

    # Byte-sized, dtype-aware tile: 2048 rows for f32, 4096 for bf16, ...
    if tile_rows is None:
        itemsize = max(jnp.dtype(pred.dtype).itemsize,
                       jnp.dtype(target.dtype).itemsize)
        tile_rows = max(_SUBLANE, tile_bytes // (_LANE * itemsize))
    tm = min(tile_rows, m)
    tm = ((tm + _SUBLANE - 1) // _SUBLANE) * _SUBLANE
    nk = -(-m // tm)

    # Flatten.  Only pad when n is not lane-aligned (unavoidable to build
    # (m, 128) rows); ragged k-tiles are masked inside the kernel instead of
    # being padded in HBM.  No dtype pre-cast: the kernel upcasts on load.
    pred_f = pred.reshape(B, n)
    target_f = target.reshape(B, n)
    lane_pad = m * _LANE - n
    if lane_pad:
        pad = ((0, 0), (0, lane_pad))
        pred_f = jnp.pad(pred_f, pad)
        target_f = jnp.pad(target_f, pad)
    pred_f = pred_f.reshape(B, m, _LANE)
    target_f = target_f.reshape(B, m, _LANE)

    cost = pl.CostEstimate(
        flops=4 * B * n,
        transcendentals=0,
        bytes_accessed=B * m * _LANE * (jnp.dtype(pred.dtype).itemsize
                                        + jnp.dtype(target.dtype).itemsize)
        + B * _SUBLANE * _LANE * 4,
    )

    kernel = functools.partial(_iou_kernel, tm=tm, m_rows=m)

    out = pl.pallas_call(
        kernel,
        out_shape=jax.ShapeDtypeStruct((B, _SUBLANE, _LANE), jnp.float32),
        grid_spec=pltpu.PrefetchScalarGridSpec(
            num_scalar_prefetch=0,
            grid=(B, nk),
            in_specs=[
                # Leading batch dim squeezed -> kernel refs are 2-D (TM, 128).
                pl.BlockSpec((None, tm, _LANE), lambda b, k: (b, k, 0)),
                pl.BlockSpec((None, tm, _LANE), lambda b, k: (b, k, 0)),
            ],
            out_specs=pl.BlockSpec((None, _SUBLANE, _LANE), lambda b, k: (b, 0, 0)),
            scratch_shapes=[
                pltpu.VMEM((_SUBLANE, _LANE), jnp.float32),  # acc of t*p
                pltpu.VMEM((_SUBLANE, _LANE), jnp.float32),  # acc of t+p
            ],
        ),
        compiler_params=pltpu.CompilerParams(
            # batch axis parallel (megacore), reduction axis arbitrary.
            dimension_semantics=("parallel", "arbitrary"),
        ),
        cost_estimate=cost,
    )(pred_f, target_f)

    # Tiny per-batch mean stays in XLA.
    return jnp.mean(out[:, 0, 0])


def _iou_ref(pred, target):
    """Plain-JAX reference mirroring the PyTorch _iou loop."""
    b = pred.shape[0]
    total = 0.0
    for i in range(b):
        t = target[i].astype(jnp.float32)
        p = pred[i].astype(jnp.float32)
        iand = jnp.sum(t * p)
        ior = jnp.sum(t) + jnp.sum(p) - iand
        total = total + (1.0 - iand / ior)
    return total / b


if __name__ == "__main__":
    key = jax.random.PRNGKey(0)
    k1, k2, k3, k4 = jax.random.split(key, 4)

    # Lane-aligned case (n = 4*16*16 = 1024).
    B, C, H, W = 2, 4, 16, 16
    pred = jax.random.uniform(k1, (B, C, H, W), dtype=jnp.float32)
    target = (jax.random.uniform(k2, (B, C, H, W), dtype=jnp.float32) > 0.5).astype(
        jnp.float32
    )
    out = jax.block_until_ready(iou_loss(pred, target))
    ref = _iou_ref(pred, target)
    assert jnp.allclose(out, ref, rtol=1e-5, atol=1e-5), (out, ref)

    # Ragged case (n = 3*10*10 = 300): exercises lane pad + in-kernel row mask.
    B2, C2, H2, W2 = 2, 3, 10, 10
    pred2 = jax.random.uniform(k3, (B2, C2, H2, W2), dtype=jnp.float32)
    target2 = (jax.random.uniform(k4, (B2, C2, H2, W2), dtype=jnp.float32) > 0.5
               ).astype(jnp.float32)
    out2 = jax.block_until_ready(iou_loss(pred2, target2))
    ref2 = _iou_ref(pred2, target2)
    assert jnp.allclose(out2, ref2, rtol=1e-5, atol=1e-5), (out2, ref2)

    print("KERNEL_OK")
</pallas_src>

<mosaic_0001>
module attributes {stable_mosaic.version = 11 : i64} {
  func.func @_iou_kernel(%arg0: i32, %arg1: i32, %arg2: memref<1x8x128xf32, #tpu.memory_space<vmem>>, %arg3: memref<1x8x128xf32, #tpu.memory_space<vmem>>, %arg4: memref<1x8x128xf32, #tpu.memory_space<vmem>>, %arg5: memref<8x128xf32, #tpu.memory_space<vmem>>, %arg6: memref<8x128xf32, #tpu.memory_space<vmem>>) attributes {dimension_semantics = [#tpu.dimension_semantics<parallel>, #tpu.dimension_semantics<arbitrary>], iteration_bounds = array<i64: 2, 1>, scalar_prefetch = 0 : i64, scratch_operands = 2 : i64, tpu.core_type = #tpu.core_type<tc>, window_params = [{transform_indices = @transform_0, window_bounds = array<i64: 1, 8, 128>}, {transform_indices = @transform_1, window_bounds = array<i64: 1, 8, 128>}, {transform_indices = @transform_2, window_bounds = array<i64: 1, 8, 128>}]} {
    %c0_i32 = arith.constant 0 : i32
    %0 = arith.cmpi eq, %arg1, %c0_i32 : i32
    %1 = arith.extui %0 : i1 to i32
    %c0_i32_0 = arith.constant 0 : i32
    %2 = arith.cmpi ne, %1, %c0_i32_0 : i32
    scf.if %2 {
      %cst_15 = arith.constant 0.000000e+00 : f32
      %25 = vector.broadcast %cst_15 : f32 to vector<8x128xf32>
      %c0_16 = arith.constant 0 : index
      %c0_17 = arith.constant 0 : index
      %26 = vector.load %arg5[%c0_16, %c0_17] : memref<8x128xf32, #tpu.memory_space<vmem>>, vector<8x128xf32>
      tpu.vector_store %arg5[%c0_16, %c0_17], %25 {strides = array<i32>} : memref<8x128xf32, #tpu.memory_space<vmem>>, vector<8x128xf32>,
      %cst_18 = arith.constant 0.000000e+00 : f32
      %27 = vector.broadcast %cst_18 : f32 to vector<8x128xf32>
      %c0_19 = arith.constant 0 : index
      %c0_20 = arith.constant 0 : index
      %28 = vector.load %arg6[%c0_19, %c0_20] : memref<8x128xf32, #tpu.memory_space<vmem>>, vector<8x128xf32>
      tpu.vector_store %arg6[%c0_19, %c0_20], %27 {strides = array<i32>} : memref<8x128xf32, #tpu.memory_space<vmem>>, vector<8x128xf32>,
    } else {
    }
    %cst = arith.constant 0.000000e+00 : f32
    %3 = vector.broadcast %cst : f32 to vector<8x128xf32>
    %c0_i32_1 = arith.constant 0 : i32
    %c8_i32 = arith.constant 8 : i32
    %4 = arith.muli %c0_i32_1, %c8_i32 : i32
    %5 = tpu.assume_multiple %4, 8 : i32
    %c0 = arith.constant 0 : index
    %6 = arith.index_cast %5 : i32 to index
    %c0_2 = arith.constant 0 : index
    %7 = vector.load %arg3[%c0, %6, %c0_2] : memref<1x8x128xf32, #tpu.memory_space<vmem>>, vector<1x8x128xf32>
    %8 = vector.shape_cast %7 : vector<1x8x128xf32> to vector<8x128xf32>
    %c0_3 = arith.constant 0 : index
    %9 = arith.index_cast %5 : i32 to index
    %c0_4 = arith.constant 0 : index
    %10 = vector.load %arg2[%c0_3, %9, %c0_4] : memref<1x8x128xf32, #tpu.memory_space<vmem>>, vector<1x8x128xf32>
    %11 = vector.shape_cast %10 : vector<1x8x128xf32> to vector<8x128xf32>
    %12 = arith.mulf %8, %11 : vector<8x128xf32>
    %13 = arith.addf %3, %12 : vector<8x128xf32>
    %14 = arith.addf %8, %11 : vector<8x128xf32>
    %15 = arith.addf %3, %14 : vector<8x128xf32>
    %c1_i32 = arith.constant 1 : i32
    %c0_5 = arith.constant 0 : index
    %c0_6 = arith.constant 0 : index
    %16 = vector.load %arg5[%c0_5, %c0_6] : memref<8x128xf32, #tpu.memory_space<vmem>>, vector<8x128xf32>
    %17 = arith.addf %16, %13 : vector<8x128xf32>
    %c0_7 = arith.constant 0 : index
    %c0_8 = arith.constant 0 : index
    %18 = vector.load %arg5[%c0_7, %c0_8] : memref<8x128xf32, #tpu.memory_space<vmem>>, vector<8x128xf32>
    tpu.vector_store %arg5[%c0_7, %c0_8], %17 {strides = array<i32>} : memref<8x128xf32, #tpu.memory_space<vmem>>, vector<8x128xf32>,
    %c0_9 = arith.constant 0 : index
    %c0_10 = arith.constant 0 : index
    %19 = vector.load %arg6[%c0_9, %c0_10] : memref<8x128xf32, #tpu.memory_space<vmem>>, vector<8x128xf32>
    %20 = arith.addf %19, %15 : vector<8x128xf32>
    %c0_11 = arith.constant 0 : index
    %c0_12 = arith.constant 0 : index
    %21 = vector.load %arg6[%c0_11, %c0_12] : memref<8x128xf32, #tpu.memory_space<vmem>>, vector<8x128xf32>
    tpu.vector_store %arg6[%c0_11, %c0_12], %20 {strides = array<i32>} : memref<8x128xf32, #tpu.memory_space<vmem>>, vector<8x128xf32>,
    %c0_i32_13 = arith.constant 0 : i32
    %22 = arith.cmpi eq, %arg1, %c0_i32_13 : i32
    %23 = arith.extui %22 : i1 to i32
    %c0_i32_14 = arith.constant 0 : i32
    %24 = arith.cmpi ne, %23, %c0_i32_14 : i32
    scf.if %24 {
      %c0_15 = arith.constant 0 : index
      %c0_16 = arith.constant 0 : index
      %25 = vector.load %arg5[%c0_15, %c0_16] : memref<8x128xf32, #tpu.memory_space<vmem>>, vector<8x128xf32>
      %26 = vector.shape_cast %25 : vector<8x128xf32> to vector<1x8x128xf32>
      %cst_17 = arith.constant dense<0.000000e+00> : vector<1xf32>
      %27 = vector.multi_reduction <add>, %26, %cst_17 [1, 2] : vector<1x8x128xf32> to vector<1xf32>
      %28 = vector.shape_cast %27 : vector<1xf32> to vector<1x1x1xf32>
      %29 = vector.extract %28[0, 0, 0] : f32 from vector<1x1x1xf32>
      %c0_18 = arith.constant 0 : index
      %c0_19 = arith.constant 0 : index
      %30 = vector.load %arg6[%c0_18, %c0_19] : memref<8x128xf32, #tpu.memory_space<vmem>>, vector<8x128xf32>
      %31 = vector.shape_cast %30 : vector<8x128xf32> to vector<1x8x128xf32>
      %cst_20 = arith.constant dense<0.000000e+00> : vector<1xf32>
      %32 = vector.multi_reduction <add>, %31, %cst_20 [1, 2] : vector<1x8x128xf32> to vector<1xf32>
      %33 = vector.shape_cast %32 : vector<1xf32> to vector<1x1x1xf32>
      %34 = vector.extract %33[0, 0, 0] : f32 from vector<1x1x1xf32>
      %35 = arith.subf %34, %29 : f32
      %36 = arith.divf %29, %35 : f32
      %cst_21 = arith.constant 1.000000e+00 : f32
      %37 = arith.subf %cst_21, %36 : f32
      %38 = vector.broadcast %37 : f32 to vector<8x128xf32>
      %c0_22 = arith.constant 0 : index
      %c0_23 = arith.constant 0 : index
      %c0_24 = arith.constant 0 : index
      %39 = vector.load %arg4[%c0_22, %c0_23, %c0_24] : memref<1x8x128xf32, #tpu.memory_space<vmem>>, vector<1x8x128xf32>
      %40 = vector.shape_cast %39 : vector<1x8x128xf32> to vector<8x128xf32>
      %41 = vector.shape_cast %38 : vector<8x128xf32> to vector<1x8x128xf32>
      tpu.vector_store %arg4[%c0_22, %c0_23, %c0_24], %41 {strides = array<i32>} : memref<1x8x128xf32, #tpu.memory_space<vmem>>, vector<1x8x128xf32>,
    } else {
    }
    return
  }
  func.func @transform_0(%arg0: i32, %arg1: i32) -> (i32, i32, i32) {
    %c0_i32 = arith.constant 0 : i32
    %c0_i32_0 = arith.constant 0 : i32
    return %arg0, %arg1, %c0_i32 : i32, i32, i32
  }
  func.func @transform_1(%arg0: i32, %arg1: i32) -> (i32, i32, i32) {
    %c0_i32 = arith.constant 0 : i32
    %c0_i32_0 = arith.constant 0 : i32
    return %arg0, %arg1, %c0_i32 : i32, i32, i32
  }
  func.func @transform_2(%arg0: i32, %arg1: i32) -> (i32, i32, i32) {
    %c0_i32 = arith.constant 0 : i32
    %c0_i32_0 = arith.constant 0 : i32
    %c0_i32_1 = arith.constant 0 : i32
    return %arg0, %c0_i32, %c0_i32_0 : i32, i32, i32
  }
}

</mosaic_0001>

<llo_original>
// kernel: tpu_custom_call.1
$region0: #{tpu_custom_call.1}
  #allocation0 [shape = 'u32[]', space=smem, size = 0x4, offset = 0x4, fixed_abs, tag = 'smem constant byte address 0x4 - core index']
  #allocation1 [shape = 'u32[144,128]{1,0:T(1,128)}', space=vmem, size = 0x12000, scoped, tag = 'internal scratch']
  #allocation2 [shape = 'f32[8,128]{1,0:T(8,128)}', space=vmem, size = 0x1000, scoped, tag = 'scratch operand']
  #allocation3 [shape = 'f32[8,128]{1,0:T(8,128)}', space=vmem, size = 0x1000, scoped, tag = 'scratch operand']
  %s0 = inlined_call_operand.hbm [shape: f32[2,8,128], index: 0, kind: input, shape index: {}]
  %s1 = inlined_call_operand.hbm [shape: f32[2,8,128], index: 1, kind: input, shape index: {}]
  %s2 = inlined_call_operand.hbm [shape: f32[2,8,128], index: 2, kind: output, shape index: {}]
  %s3 = sld [smem:[#allocation0]]
  $region57: #{tpu_custom_call.1} parent=0
    _
  %s5 = ssub.s32 1, %s3
  %s6 = scalar_select 0, %s5, %s3
  $region1: #{tpu_custom_call.1} parent=0
    #allocation4 [shape = 'u8[8192]{0}', space=vmem, size = 0x2000, scoped, tag = 'input window, operand 0']
    #allocation5 [shape = 's32[2]{0}', space=sflag, size = 0x8, scoped, tag = 'scoped memory for tpu_custom_call.1']
    #allocation6 [shape = 's32[2]{0}', space=sflag, size = 0x8, scoped, tag = 'scoped memory for tpu_custom_call.1']
    #allocation7 [shape = 'u8[8192]{0}', space=vmem, size = 0x2000, scoped, tag = 'input window, operand 1']
    #allocation8 [shape = 's32[2]{0}', space=sflag, size = 0x8, scoped, tag = 'scoped memory for tpu_custom_call.1']
    #allocation9 [shape = 'u8[8192]{0}', space=vmem, size = 0x2000, scoped, tag = 'output window, operand 0']
    %7 = vsyncpa [#allocation5], 0
    %s8 = scalar_lea.sflag [#allocation5], 1
    %9 = vsyncpa %s8, 0
    %10 = vsyncpa [#allocation8], 0
    %s11 = scalar_lea.sflag [#allocation8], 1
    %12 = vsyncpa %s11, 0
    %13 = vsyncpa [#allocation6], 0
    %s14 = scalar_lea.sflag [#allocation6], 1
    %15 = vsyncpa %s14, 0
    loop: start=0, step=1, limit=4
    $region2: #{tpu_custom_call.1} parent=1 // loop_pre_header
      _
    $region3: #{tpu_custom_call.1} parent=1 // loop_header
      %s17 = sphi 0, %s21
      %p18 = scmp.ge.s32.totalorder %s17, 4
      %s24 = sphi 0, %s36
      %s25 = sphi 0, %s32
      %s26 = sphi 0, %s24
      %s27 = sphi 0, %s25
      %s28 = sphi 0, %s26
      %s29 = sphi 0, %s27
      %s41 = sphi 0, %s43
      %s44 = sphi 0, %s41
      %s45 = sphi 0, %s44
      %s61 = sphi 0, %s45
      %s69 = sphi 0, %s71
      %s72 = sphi 0, %s69
      %s73 = sphi 0, %s72
      %s89 = sphi 0, %s73
      %s95 = sphi 0, %s97
      %s98 = sphi 0, %s95
      %s99 = sphi 0, %s98
      %s115 = sphi 0, %s99
    $region4: #{tpu_custom_call.1} parent=1 // loop_header_branch
      %20 = sbr.rel (%p18) target = $region8
    $region5: #{tpu_custom_call.1} parent=1 // loop_body
      %s22 = ssub.s32 %s17, 1
      %s23 = ssub.s32 %s17, 2
      %s30 = sadd.s32 1, %s25
      %p31 = scmp.ge.s32.totalorder %s30, 1
      %s32 = scalar_select %p31, 0, %s30
      %s33 = sadd.s32 1, %s24
      %s34 = scalar_select %p31, %s33, %s24
      %p35 = scmp.ge.s32.totalorder %s34, 2
      %s36 = scalar_select %p35, 0, %s34
      %s37 = ssub.s32 %s24, %s36
      %s38 = ssub.s32 %s25, %s32
      %s39 = sor.u32 %s37, %s38
      %p40 = scmp.eq.s32.totalorder %s39, 0
      %s42 = sadd.s32 %s41, 1
      %s43 = scalar_select %p40, %s41, %s42
      %p46 = pneg %p40
      %p47 = scmp.eq.s32.totalorder %s17, 1
      %p48 = por %p46, %p47
      %p49 = scmp.ne.s32.totalorder %s41, %s44
      %p50 = scmp.eq.s32.totalorder %s17, 0
      %p51 = por %p49, %p50
      %p52 = scmp.ne.s32.totalorder %s41, %s44
      %p53 = scmp.eq.s32.totalorder %s22, 1
      %p54 = por %p52, %p53
      %p55 = scmp.ne.s32.totalorder %s44, %s45
      %p56 = scmp.eq.s32.totalorder %s22, 0
      %p57 = por %p55, %p56
      %p58 = scmp.ne.s32.totalorder %s44, %s45
      %p59 = scmp.eq.s32.totalorder %s23, 1
      %p60 = por %p58, %p59
      %p62 = scmp.ne.s32.totalorder %s45, %s61
      %p63 = scmp.eq.s32.totalorder %s23, 0
      %p64 = por %p62, %p63
      %s65 = ssub.s32 %s24, %s36
      %s66 = ssub.s32 %s25, %s32
      %s67 = sor.u32 %s65, %s66
      %p68 = scmp.eq.s32.totalorder %s67, 0
      %s70 = sadd.s32 %s69, 1
      %s71 = scalar_select %p68, %s69, %s70
      %p74 = pneg %p68
      %p75 = scmp.eq.s32.totalorder %s17, 1
      %p76 = por %p74, %p75
      %p77 = scmp.ne.s32.totalorder %s69, %s72
      %p78 = scmp.eq.s32.totalorder %s17, 0
      %p79 = por %p77, %p78
      %p80 = scmp.ne.s32.totalorder %s69, %s72
      %p81 = scmp.eq.s32.totalorder %s22, 1
      %p82 = por %p80, %p81
      %p83 = scmp.ne.s32.totalorder %s72, %s73
      %p84 = scmp.eq.s32.totalorder %s22, 0
      %p85 = por %p83, %p84
      %p86 = scmp.ne.s32.totalorder %s72, %s73
      %p87 = scmp.eq.s32.totalorder %s23, 1
      %p88 = por %p86, %p87
      %p90 = scmp.ne.s32.totalorder %s73, %s89
      %p91 = scmp.eq.s32.totalorder %s23, 0
      %p92 = por %p90, %p91
      %s93 = ssub.s32 %s24, %s36
      %p94 = scmp.eq.s32.totalorder %s93, 0
      %s96 = sadd.s32 %s95, 1
      %s97 = scalar_select %p94, %s95, %s96
      %p100 = pneg %p94
      %p101 = scmp.eq.s32.totalorder %s17, 1
      %p102 = por %p100, %p101
      %p103 = scmp.ne.s32.totalorder %s95, %s98
      %p104 = scmp.eq.s32.totalorder %s17, 0
      %p105 = por %p103, %p104
      %p106 = scmp.ne.s32.totalorder %s95, %s98
      %p107 = scmp.eq.s32.totalorder %s22, 1
      %p108 = por %p106, %p107
      %p109 = scmp.ne.s32.totalorder %s98, %s99
      %p110 = scmp.eq.s32.totalorder %s22, 0
      %p111 = por %p109, %p110
      %p112 = scmp.ne.s32.totalorder %s98, %s99
      %p113 = scmp.eq.s32.totalorder %s23, 1
      %p114 = por %p112, %p113
      %p116 = scmp.ne.s32.totalorder %s99, %s115
      %p117 = scmp.eq.s32.totalorder %s23, 0
      %p118 = por %p116, %p117
      %p119 = scmp.le.s32.totalorder 1, %s17
      %p120 = scmp.lt.s32.totalorder %s17, 3
      %p121 = pnand %p119, %p120
      %p122 = pneg %p121
      // Predicated region
      $region9: #{tpu_custom_call.1} parent=5 // pred_check
        _
      $region10: #{tpu_custom_call.1} parent=5 // pred_check_branch
        %124 = sbr.rel (%p121) target = $region12
      $region11: #{tpu_custom_call.1} parent=5 // pred_region
        %s125 = ssub.s32 %s17, 1
      $region12: #{tpu_custom_call.1} parent=5 // pred_fallthru
        _
      %p126 = scmp.lt.s32.totalorder %s17, 2
      // Predicated region
      $region13: #{tpu_custom_call.1} parent=5 // pred_check
        %p127 = pneg %p126
      $region14: #{tpu_custom_call.1} parent=5 // pred_check_branch
        %129 = sbr.rel (%p127) target = $region16
      $region15: #{tpu_custom_call.1} parent=5 // pred_region
        // Predicated region
        $region17: #{tpu_custom_call.1} parent=15 // pred_check
          %p130 = pneg %p51
        $region18: #{tpu_custom_call.1} parent=15 // pred_check_branch
          %132 = sbr.rel (%p130) target = $region20
        $region19: #{tpu_custom_call.1} parent=15 // pred_region
          %s133 = sand.u32 %s41, 1
          %s134 = scalar_lea.sflag [#allocation5], %s133
          %s135 = sand.u32 %s41, 1
          %s136 = smul.addr %s135, 8
          %s137 = scalar_lea.vmem [#allocation4], %s136
          %s139 = ssub.s32 128, 128
          %140 = vsyncadd %s134, %s139
          %s141 = sadd.s32 %s25, %s24
          %s142 = smul.addr %s141, 128
          %s143 = scalar_lea.hbm %s0, %s142
          %s145 = sshll.u32 %s137, 4
          %s146 = int_to_ptr.vmem [resolvable:$true] %s145
          %148 = dma.hbm_to_vmem [thread:$0]  %s143, 128, %s146, %s134
        $region20: #{tpu_custom_call.1} parent=15 // pred_fallthru
          _
        // Predicated region
        $region21: #{tpu_custom_call.1} parent=15 // pred_check
          %p149 = pneg %p79
        $region22: #{tpu_custom_call.1} parent=15 // pred_check_branch
          %151 = sbr.rel (%p149) target = $region24
        $region23: #{tpu_custom_call.1} parent=15 // pred_region
          %s152 = sand.u32 %s69, 1
          %s153 = scalar_lea.sflag [#allocation8], %s152
          %s154 = sand.u32 %s69, 1
          %s155 = smul.addr %s154, 8
          %s156 = scalar_lea.vmem [#allocation7], %s155
          %s158 = ssub.s32 128, 128
          %159 = vsyncadd %s153, %s158
          %s160 = sadd.s32 %s25, %s24
          %s161 = smul.addr %s160, 128
          %s162 = scalar_lea.hbm %s1, %s161
          %s164 = sshll.u32 %s156, 4
          %s165 = int_to_ptr.vmem [resolvable:$true] %s164
          %167 = dma.hbm_to_vmem [thread:$0]  %s162, 128, %s165, %s153
        $region24: #{tpu_custom_call.1} parent=15 // pred_fallthru
          _
      $region16: #{tpu_custom_call.1} parent=5 // pred_fallthru
        _
      %p168 = scmp.le.s32.totalorder 1, %s17
      %p169 = scmp.lt.s32.totalorder %s17, 3
      %p170 = pnand %p168, %p169
      %p171 = pneg %p170
      // Predicated region
      $region25: #{tpu_custom_call.1} parent=5 // pred_check
        _
      $region26: #{tpu_custom_call.1} parent=5 // pred_check_branch
        %173 = sbr.rel (%p170) target = $region28
      $region27: #{tpu_custom_call.1} parent=5 // pred_region
        %s174 = ssub.s32 %s17, 1
        %s175 = sand.u32 %s44, 1
        %s176 = scalar_lea.sflag [#allocation5], %s175
        %s177 = sand.u32 %s44, 1
        %s178 = smul.addr %s177, 8
        %s179 = scalar_lea.vmem [#allocation4], %s178
        // Predicated region
        $region29: #{tpu_custom_call.1} parent=27 // pred_check
          %p180 = pneg %p57
        $region30: #{tpu_custom_call.1} parent=27 // pred_check_branch
          %182 = sbr.rel (%p180) target = $region32
        $region31: #{tpu_custom_call.1} parent=27 // pred_region
          %183 = dma.done %s176, 128
        $region32: #{tpu_custom_call.1} parent=27 // pred_fallthru
          _
        %s184 = sand.u32 %s72, 1
        %s185 = scalar_lea.sflag [#allocation8], %s184
        %s186 = sand.u32 %s72, 1
        %s187 = smul.addr %s186, 8
        %s188 = scalar_lea.vmem [#allocation7], %s187
        // Predicated region
        $region33: #{tpu_custom_call.1} parent=27 // pred_check
          %p189 = pneg %p85
        $region34: #{tpu_custom_call.1} parent=27 // pred_check_branch
          %191 = sbr.rel (%p189) target = $region36
        $region35: #{tpu_custom_call.1} parent=27 // pred_region
          %192 = dma.done %s185, 128
        $region36: #{tpu_custom_call.1} parent=27 // pred_fallthru
          _
        %s193 = sand.u32 %s44, 1
        %s194 = scalar_lea.sflag [#allocation5], %s193
        %s195 = sand.u32 %s44, 1
        %s196 = smul.addr %s195, 8
        %s197 = scalar_lea.vmem [#allocation4], %s196
        %p198 = pneg %p57
        %p199 = pneg %p54
        %s200 = sand.u32 %s72, 1
        %s201 = scalar_lea.sflag [#allocation8], %s200
        %s202 = sand.u32 %s72, 1
        %s203 = smul.addr %s202, 8
        %s204 = scalar_lea.vmem [#allocation7], %s203
        %p205 = pneg %p85
        %p206 = pneg %p82
        %p207 = pneg %p111
        %p208 = pneg %p108
        %s209 = sand.u32 %s98, 1
        %s210 = scalar_lea.sflag [#allocation6], %s209
        %s211 = sand.u32 %s98, 1
        %s212 = smul.addr %s211, 8
        %s213 = scalar_lea.vmem [#allocation9], %s212
        %p214 = scmp.eq.s32.totalorder %s27, 0
        // Predicated region
        $region37: #{tpu_custom_call.1} parent=27 // pred_check
          %p215 = pneg %p214
        $region38: #{tpu_custom_call.1} parent=27 // pred_check_branch
          %217 = sbr.rel (%p215) target = $region40
        $region39: #{tpu_custom_call.1} parent=27 // pred_region
          %218 = vst [vmem:[#allocation2] sm:$0xff] 0.0
          %219 = vst [vmem:[#allocation3] sm:$0xff] 0.0
        $region40: #{tpu_custom_call.1} parent=27 // pred_fallthru
          _
        %v220 = vld [vmem:[%s188] sm:$0xff]
        %v221 = vld [vmem:[%s179] sm:$0xff]
        %v222 = vmul.f32 %v220, %v221
        %v223 = vadd.f32 %v222, 0.0
        %v224 = vadd.f32 %v220, %v221
        %v225 = vadd.f32 %v224, 0.0
        %v226 = vld [vmem:[#allocation2] sm:$0xff]
        %v227 = vadd.f32 %v226, %v223
        %228 = vst [vmem:[#allocation2] sm:$0xff] %v227
        %v229 = vld [vmem:[#allocation3] sm:$0xff]
        %v230 = vadd.f32 %v229, %v225
        %231 = vst [vmem:[#allocation3] sm:$0xff] %v230
        // Predicated region
        $region41: #{tpu_custom_call.1} parent=27 // pred_check
          %p232 = pneg %p214
        $region42: #{tpu_custom_call.1} parent=27 // pred_check_branch
          %234 = sbr.rel (%p232) target = $region44
        $region43: #{tpu_custom_call.1} parent=27 // pred_region
          %v235 = vld [vmem:[#allocation2] sm:$0xff]
          %236 = vadd.xlane.f32.xlu0 %v235
          %v237 = vpop.xlane.xlu0 %236
          %v238 = vrot.slane %v237, 4
          %v239 = vadd.f32 %v237, %v238
          %v240 = vrot.slane %v239, 2
          %v241 = vadd.f32 %v239, %v240
          %v242 = vrot.slane %v241, 1
          %v243 = vadd.f32 %v241, %v242
          %s244 = vtos %v243
          %v245 = vld [vmem:[#allocation3] sm:$0xff]
          %246 = vadd.xlane.f32.xlu0 %v245
          %v247 = vpop.xlane.xlu0 %246
          %v248 = vrot.slane %v247, 4
          %v249 = vadd.f32 %v247, %v248
          %v250 = vrot.slane %v249, 2
          %v251 = vadd.f32 %v249, %v250
          %v252 = vrot.slane %v251, 1
          %v253 = vadd.f32 %v251, %v252
          %s254 = vtos %v253
          %s255 = ssub.f32 %s254, %s244
          %v256 = vstv %s255
          %v257 = vrcp.pop %v256
          %s258 = vtos %v257
          %s259 = smul.f32 %s244, %s258
          %s260 = ssub.f32 1.0, %s259
          %v261 = vstv %s260
          %262 = vst [vmem:[%s213] sm:$0xff] %v261
        $region44: #{tpu_custom_call.1} parent=27 // pred_fallthru
          _
        %s263 = sand.u32 %s98, 1
        %s264 = scalar_lea.sflag [#allocation6], %s263
        %s265 = sand.u32 %s98, 1
        %s266 = smul.addr %s265, 8
        %s267 = scalar_lea.vmem [#allocation9], %s266
        // Predicated region
        $region45: #{tpu_custom_call.1} parent=27 // pred_check
          %p268 = pneg %p108
        $region46: #{tpu_custom_call.1} parent=27 // pred_check_branch
          %270 = sbr.rel (%p268) target = $region48
        $region47: #{tpu_custom_call.1} parent=27 // pred_region
          %s272 = ssub.s32 128, 128
          %273 = vsyncadd %s264, %s272
          %s274 = smul.addr %s26, 128
          %s275 = scalar_lea.hbm %s2, %s274
          %s277 = sshll.u32 %s267, 4
          %s278 = int_to_ptr.vmem [resolvable:$true] %s277
          %280 = dma.vmem_to_hbm [thread:$0]  %s278, 128, %s275, %s264
        $region48: #{tpu_custom_call.1} parent=27 // pred_fallthru
          _
      $region28: #{tpu_custom_call.1} parent=5 // pred_fallthru
        _
      %p281 = scmp.le.s32.totalorder 2, %s17
      // Predicated region
      $region49: #{tpu_custom_call.1} parent=5 // pred_check
        %p282 = pneg %p281
      $region50: #{tpu_custom_call.1} parent=5 // pred_check_branch
        %284 = sbr.rel (%p282) target = $region52
      $region51: #{tpu_custom_call.1} parent=5 // pred_region
        %s285 = ssub.s32 %s17, 2
        // Predicated region
        $region53: #{tpu_custom_call.1} parent=51 // pred_check
          %p286 = pneg %p114
        $region54: #{tpu_custom_call.1} parent=51 // pred_check_branch
          %288 = sbr.rel (%p286) target = $region56
        $region55: #{tpu_custom_call.1} parent=51 // pred_region
          %s289 = sand.u32 %s99, 1
          %s290 = scalar_lea.sflag [#allocation6], %s289
          %s291 = sand.u32 %s99, 1
          %s292 = smul.addr %s291, 8
          %s293 = scalar_lea.vmem [#allocation9], %s292
          %294 = dma.done %s290, 128
        $region56: #{tpu_custom_call.1} parent=51 // pred_fallthru
          _
      $region52: #{tpu_custom_call.1} parent=5 // pred_fallthru
        _
    $region6: #{tpu_custom_call.1} parent=1 // loop_footer
      %s21 = sadd.s32 1, %s17
    $region7: #{tpu_custom_call.1} parent=1 // loop_footer_branch
      %16 = sbr.rel target = $region3
    $region8: #{tpu_custom_call.1} parent=1 // loop_exit
      _
    %295 = vsyncpa [#allocation5], 1
    %s296 = scalar_lea.sflag [#allocation5], 1
    %297 = vsyncpa %s296, 1
    %298 = vsyncpa [#allocation8], 1
    %s299 = scalar_lea.sflag [#allocation8], 1
    %300 = vsyncpa %s299, 1
    %301 = vsyncpa [#allocation6], 1
    %s302 = scalar_lea.sflag [#allocation6], 1
    %303 = vsyncpa %s302, 1

</llo_original>
